<compile_context>
chip_gen: v7x
topology: tpu7x:2x2x1
jax: 0.10.0
libtpu: 0.0.40
codegen_flags: <defaults>
</compile_context>

<pallas_src>
import functools

import jax
import jax.numpy as jnp
from jax.experimental import pallas as pl
from jax.experimental.pallas import tpu as pltpu

LN_EPS = 1e-5
LEAKY_SLOPE = 0.01  # nn.LeakyReLU default negative_slope
LANE = 128
SUBLANE = 8


def _round_up(n, m):
    return ((n + m - 1) // m) * m


def _vmem_capacity_bytes():
    try:
        return int(pltpu.get_tpu_info().vmem_capacity_bytes)
    except Exception:
        return 64 * 1024 * 1024  # conservative (v7x per-TC VMEM)


# ---------------------------------------------------------------------------
# Parameter packing (done ONCE, outside the per-forward hot path)
# ---------------------------------------------------------------------------
def pack_params(hidden_params, out_params, *, use_bf16=True):
    """Pad & pack parameters once.

    Returns (weights, vec, dims, pdims):
      weights : tuple of (prev_pad, h_pad) zero-padded matrices (bf16 if use_bf16),
                last entry is the output projection.
      vec     : (3*n_hidden + 1, max_pad) f32 buffer; rows 3i..3i+2 hold
                bias/gamma/beta of hidden layer i, last row is the final bias.
                Zero in all padded columns.
      dims    : real feature dims  (in, h0, ..., out)
      pdims   : lane-padded feature dims (multiples of 128)
    """
    w_out, b_out = out_params
    d_in = int(hidden_params[0]["w"].shape[0]) if hidden_params else int(w_out.shape[0])
    dims = tuple([d_in] + [int(p["w"].shape[1]) for p in hidden_params]
                 + [int(w_out.shape[1])])
    pdims = tuple(_round_up(d, LANE) for d in dims)
    max_pad = max(pdims[1:])
    w_dtype = jnp.bfloat16 if use_bf16 else jnp.float32

    weights = []
    vec_rows = []
    for li, p in enumerate(hidden_params):
        w = p["w"]
        w_p = jnp.pad(w, ((0, pdims[li] - w.shape[0]),
                          (0, pdims[li + 1] - w.shape[1]))).astype(w_dtype)
        weights.append(w_p)
        for v in (p["b"], p["gamma"], p["beta"]):
            vec_rows.append(jnp.pad(v.astype(jnp.float32),
                                    ((0, 0), (0, max_pad - v.shape[1]))))
    w_out_p = jnp.pad(w_out, ((0, pdims[-2] - w_out.shape[0]),
                              (0, pdims[-1] - w_out.shape[1]))).astype(w_dtype)
    weights.append(w_out_p)
    vec_rows.append(jnp.pad(b_out.astype(jnp.float32),
                            ((0, 0), (0, max_pad - b_out.shape[1]))))
    vec = jnp.concatenate(vec_rows, axis=0)  # (3*n_hidden + 1, max_pad)
    return tuple(weights), vec, dims, pdims


# ---------------------------------------------------------------------------
# Fused kernel body
# ---------------------------------------------------------------------------
def _make_fused_kernel(dims, pdims, n_hidden, mat_dtype):
    def kernel(*refs):
        # refs = [x, w_0..w_{n_hidden}, vec, o]
        x_ref = refs[0]
        w_refs = refs[1:1 + n_hidden + 1]
        vec_ref = refs[1 + n_hidden + 1]
        o_ref = refs[-1]

        h = x_ref[...]  # (TB, in_pad) in mat_dtype, padded lanes are 0
        for li in range(n_hidden):
            h_real = dims[li + 1]
            h_pad = pdims[li + 1]

            # Linear on the MXU (bf16 in, f32 accumulate).  Padded weight
            # columns / bias lanes are zero -> padded lanes of y are exactly 0.
            y = jnp.dot(h, w_refs[li][...], preferred_element_type=jnp.float32)
            y = y + vec_ref[3 * li:3 * li + 1, 0:h_pad]

            # LayerNorm over the REAL width, single pass (biased variance like
            # nn.LayerNorm).  Zero padded lanes don't perturb s1/s2.
            inv_n = 1.0 / float(h_real)
            mean = jnp.sum(y, axis=-1, keepdims=True) * inv_n
            var = jnp.sum(y * y, axis=-1, keepdims=True) * inv_n - mean * mean
            yn = (y - mean) * jax.lax.rsqrt(var + LN_EPS)
            y = (yn * vec_ref[3 * li + 1:3 * li + 2, 0:h_pad]
                 + vec_ref[3 * li + 2:3 * li + 3, 0:h_pad])  # gamma/beta (0 in padding)

            # LeakyReLU; Dropout(p=0.1) is identity in eval/inference mode.
            # TODO(synk): train-mode dropout via pltpu.prng_seed + prng_random_bits.
            h = jnp.where(y >= 0, y, LEAKY_SLOPE * y).astype(mat_dtype)

        out = jnp.dot(h, w_refs[n_hidden][...], preferred_element_type=jnp.float32)
        out = out + vec_ref[3 * n_hidden:3 * n_hidden + 1, 0:pdims[-1]]
        o_ref[...] = out.astype(o_ref.dtype)

    return kernel


# ---------------------------------------------------------------------------
# Forward
# ---------------------------------------------------------------------------
@functools.partial(
    jax.jit,
    static_argnames=("dims", "pdims", "batch_tile", "single_buffer_weights"))
def _ffnn_forward_jit(x, weights, vec, *, dims, pdims, batch_tile,
                      single_buffer_weights):
    B = x.shape[0]
    n_hidden = len(dims) - 2
    mat_dtype = weights[0].dtype
    bpe_w = jnp.dtype(mat_dtype).itemsize

    TB = min(batch_tile, _round_up(B, SUBLANE))
    B_pad = _round_up(B, TB)

    # Only the activations are padded per call; parameters were packed once.
    x_p = jnp.pad(x, ((0, B_pad - B), (0, pdims[0] - dims[0]))).astype(mat_dtype)

    # Grid-invariant weight/vec specs: constant index_map keeps them
    # VMEM-resident across batch tiles; single-buffer them when supported.
    wspec_kwargs = {}
    if single_buffer_weights and hasattr(pl, "Buffered"):
        wspec_kwargs = dict(pipeline_mode=pl.Buffered(1))

    in_specs = [pl.BlockSpec((TB, pdims[0]), lambda i: (i, 0))]
    in_specs += [pl.BlockSpec(w.shape, lambda i: (0, 0), **wspec_kwargs)
                 for w in weights]
    in_specs += [pl.BlockSpec(vec.shape, lambda i: (0, 0), **wspec_kwargs)]
    out_specs = pl.BlockSpec((TB, pdims[-1]), lambda i: (i, 0))

    # ---- VMEM feasibility / budgeting ---------------------------------------
    param_bytes = sum(int(w.size) * bpe_w for w in weights) + int(vec.size) * 4
    buf_factor = 1 if single_buffer_weights else 2
    act_bytes = 2 * TB * (pdims[0] + pdims[-1]) * (bpe_w + 4)   # double-buffered I/O tiles
    temp_bytes = 10 * TB * max(pdims) * 4                       # unrolled per-layer temporaries
    resident = param_bytes * buf_factor + act_bytes + temp_bytes
    budget = int(_vmem_capacity_bytes() * 0.85)
    if resident > budget:
        # TODO(synk): stream weight K/N tiles from HBM (memory_space=pl.ANY +
        # pltpu.emit_pipeline) instead of holding all layers VMEM-resident.
        raise NotImplementedError(
            f"FFNN resident footprint (~{resident >> 20} MiB) exceeds the VMEM "
            f"budget ({budget >> 20} MiB); streaming fallback not implemented.")

    # Advisory cost estimate on REAL dims.
    flops = 2 * B * sum(dims[i] * dims[i + 1] for i in range(len(dims) - 1))
    bytes_accessed = (B * dims[0] * 4
                      + sum(dims[i] * dims[i + 1] for i in range(len(dims) - 1)) * bpe_w
                      + sum(dims[1:-1]) * 3 * 4 + dims[-1] * 4
                      + B * dims[-1] * 4)

    kernel = _make_fused_kernel(dims, pdims, n_hidden, mat_dtype)

    out_p = pl.pallas_call(
        kernel,
        out_shape=jax.ShapeDtypeStruct((B_pad, pdims[-1]), jnp.float32),
        grid=(B_pad // TB,),
        in_specs=in_specs,
        out_specs=out_specs,
        compiler_params=pltpu.CompilerParams(
            dimension_semantics=("parallel",),  # batch tiles shard across TCs (v7x)
            vmem_limit_bytes=budget,
        ),
        cost_estimate=pl.CostEstimate(
            flops=flops,
            transcendentals=B * n_hidden,   # one rsqrt per row per LayerNorm
            bytes_accessed=bytes_accessed,
        ),
    )(x_p, *weights, vec)

    return out_p[:B, :dims[-1]]


def ffnn_forward(x, packed, *, batch_tile=256):
    """Run the fused FFNN forward on pre-packed parameters."""
    weights, vec, dims, pdims = packed
    try:
        out = _ffnn_forward_jit(x, weights, vec, dims=dims, pdims=pdims,
                                batch_tile=batch_tile, single_buffer_weights=True)
        return jax.block_until_ready(out)
    except NotImplementedError:
        raise
    except Exception:
        # pl.Buffered(1) not supported by this jax build -> default double buffering.
        out = _ffnn_forward_jit(x, weights, vec, dims=dims, pdims=pdims,
                                batch_tile=batch_tile, single_buffer_weights=False)
        return jax.block_until_ready(out)


# ---------------------------------------------------------------------------
# Init + reference
# ---------------------------------------------------------------------------
def init_params(key, input_size, hidden_sizes, output_size):
    """Deterministic parameter init (PyTorch-style uniform fan-in bounds)."""
    params = []
    prev = input_size
    for h in hidden_sizes:
        key, k_w, k_b = jax.random.split(key, 3)
        bound = 1.0 / jnp.sqrt(prev)
        w = jax.random.uniform(k_w, (prev, h), jnp.float32, -bound, bound)
        b = jax.random.uniform(k_b, (1, h), jnp.float32, -bound, bound)
        gamma = jnp.ones((1, h), jnp.float32)   # nn.LayerNorm weight init
        beta = jnp.zeros((1, h), jnp.float32)   # nn.LayerNorm bias init
        params.append(dict(w=w, b=b, gamma=gamma, beta=beta))
        prev = h
    key, k_w, k_b = jax.random.split(key, 3)
    bound = 1.0 / jnp.sqrt(prev)
    w_out = jax.random.uniform(k_w, (prev, output_size), jnp.float32, -bound, bound)
    b_out = jax.random.uniform(k_b, (1, output_size), jnp.float32, -bound, bound)
    return params, (w_out, b_out)


def ffnn_reference(x, hidden_params, out_params, matmul_dtype=jnp.float32):
    """Pure-JAX reference (unpadded). matmul_dtype mimics the kernel's MXU dtype."""
    h = x
    for p in hidden_params:
        y = jnp.dot(h.astype(matmul_dtype), p["w"].astype(matmul_dtype),
                    preferred_element_type=jnp.float32) + p["b"]
        mean = jnp.mean(y, axis=-1, keepdims=True)
        var = jnp.mean((y - mean) ** 2, axis=-1, keepdims=True)
        y = (y - mean) / jnp.sqrt(var + LN_EPS) * p["gamma"] + p["beta"]
        h = jnp.where(y >= 0, y, LEAKY_SLOPE * y)
    w_out, b_out = out_params
    return jnp.dot(h.astype(matmul_dtype), w_out.astype(matmul_dtype),
                   preferred_element_type=jnp.float32) + b_out


if __name__ == "__main__":
    input_size = 32
    hidden_sizes = [64, 32]
    output_size = 16
    batch = 8

    key = jax.random.PRNGKey(0)
    key, k_x = jax.random.split(key)
    x = jax.random.normal(k_x, (batch, input_size), jnp.float32)

    hidden_params, out_params = init_params(key, input_size, hidden_sizes, output_size)

    # Pad/pack parameters ONCE (bf16 weights for the MXU).
    packed = pack_params(hidden_params, out_params, use_bf16=True)

    out = ffnn_forward(x, packed)
    out = jax.block_until_ready(out)

    # Compare against a reference that uses the same bf16 matmul inputs
    # (only accumulation order differs -> tight tolerance).
    ref = ffnn_reference(x, hidden_params, out_params, matmul_dtype=jnp.bfloat16)
    assert out.shape == (batch, output_size)
    assert jnp.allclose(out, ref, atol=2e-3, rtol=2e-3), "mismatch vs reference"

    print("KERNEL_OK")
</pallas_src>

<mosaic_0001>
module attributes {stable_mosaic.version = 11 : i64} {
  func.func @kernel(%arg0: i32, %arg1: memref<8x128xbf16, #tpu.memory_space<vmem>>, %arg2: memref<128x128xbf16, #tpu.memory_space<vmem>>, %arg3: memref<128x128xbf16, #tpu.memory_space<vmem>>, %arg4: memref<128x128xbf16, #tpu.memory_space<vmem>>, %arg5: memref<7x128xf32, #tpu.memory_space<vmem>>, %arg6: memref<8x128xf32, #tpu.memory_space<vmem>>) attributes {dimension_semantics = [#tpu.dimension_semantics<parallel>], iteration_bounds = array<i64: 1>, scalar_prefetch = 0 : i64, scratch_operands = 0 : i64, tpu.core_type = #tpu.core_type<tc>, window_params = [{transform_indices = @transform_0, window_bounds = array<i64: 8, 128>}, {pipeline_mode = #tpu.pipeline_mode<synchronous>, transform_indices = @transform_1, window_bounds = array<i64: 128, 128>}, {pipeline_mode = #tpu.pipeline_mode<synchronous>, transform_indices = @transform_2, window_bounds = array<i64: 128, 128>}, {pipeline_mode = #tpu.pipeline_mode<synchronous>, transform_indices = @transform_3, window_bounds = array<i64: 128, 128>}, {pipeline_mode = #tpu.pipeline_mode<synchronous>, transform_indices = @transform_4, window_bounds = array<i64: 7, 128>}, {transform_indices = @transform_5, window_bounds = array<i64: 8, 128>}]} {
    %c0 = arith.constant 0 : index
    %c0_0 = arith.constant 0 : index
    %0 = vector.load %arg1[%c0, %c0_0] : memref<8x128xbf16, #tpu.memory_space<vmem>>, vector<8x128xbf16>
    %c0_1 = arith.constant 0 : index
    %c0_2 = arith.constant 0 : index
    %1 = vector.load %arg2[%c0_1, %c0_2] : memref<128x128xbf16, #tpu.memory_space<vmem>>, vector<128x128xbf16>
    %cst = arith.constant dense<0.000000e+00> : vector<8x128xf32>
    %2 = tpu.matmul %0, %1, %cst {dimension_numbers = #tpu.dot_dimension_numbers<[1], [0], [0], [1], [0, 0, 1, 1], [], []>} : vector<8x128xbf16>, vector<128x128xbf16>, vector<8x128xf32> -> vector<8x128xf32>
    %c0_3 = arith.constant 0 : index
    %c0_4 = arith.constant 0 : index
    %3 = vector.load %arg5[%c0_3, %c0_4] : memref<7x128xf32, #tpu.memory_space<vmem>>, vector<1x128xf32>
    %4 = vector.broadcast %3 : vector<1x128xf32> to vector<8x128xf32>
    %5 = arith.addf %2, %4 : vector<8x128xf32>
    %cst_5 = arith.constant dense<0.000000e+00> : vector<8xf32>
    %6 = vector.multi_reduction <add>, %5, %cst_5 [1] : vector<8x128xf32> to vector<8xf32>
    %7 = vector.shape_cast %6 : vector<8xf32> to vector<8x1xf32>
    %cst_6 = arith.constant 1.562500e-02 : f32
    %8 = vector.broadcast %cst_6 : f32 to vector<8x1xf32>
    %9 = arith.mulf %7, %8 : vector<8x1xf32>
    %10 = arith.mulf %5, %5 : vector<8x128xf32>
    %cst_7 = arith.constant dense<0.000000e+00> : vector<8xf32>
    %11 = vector.multi_reduction <add>, %10, %cst_7 [1] : vector<8x128xf32> to vector<8xf32>
    %12 = vector.shape_cast %11 : vector<8xf32> to vector<8x1xf32>
    %cst_8 = arith.constant 1.562500e-02 : f32
    %13 = vector.broadcast %cst_8 : f32 to vector<8x1xf32>
    %14 = arith.mulf %12, %13 : vector<8x1xf32>
    %15 = arith.mulf %9, %9 : vector<8x1xf32>
    %16 = arith.subf %14, %15 : vector<8x1xf32>
    %17 = vector.broadcast %9 : vector<8x1xf32> to vector<8x128xf32>
    %18 = arith.subf %5, %17 : vector<8x128xf32>
    %cst_9 = arith.constant 9.99999974E-6 : f32
    %19 = vector.broadcast %cst_9 : f32 to vector<8x1xf32>
    %20 = arith.addf %16, %19 : vector<8x1xf32>
    %21 = math.rsqrt %20 : vector<8x1xf32>
    %22 = vector.broadcast %21 : vector<8x1xf32> to vector<8x128xf32>
    %23 = arith.mulf %18, %22 : vector<8x128xf32>
    %c1 = arith.constant 1 : index
    %c0_10 = arith.constant 0 : index
    %24 = vector.load %arg5[%c1, %c0_10] : memref<7x128xf32, #tpu.memory_space<vmem>>, vector<1x128xf32>
    %25 = vector.broadcast %24 : vector<1x128xf32> to vector<8x128xf32>
    %26 = arith.mulf %23, %25 : vector<8x128xf32>
    %c2 = arith.constant 2 : index
    %c0_11 = arith.constant 0 : index
    %27 = vector.load %arg5[%c2, %c0_11] : memref<7x128xf32, #tpu.memory_space<vmem>>, vector<1x128xf32>
    %28 = vector.broadcast %27 : vector<1x128xf32> to vector<8x128xf32>
    %29 = arith.addf %26, %28 : vector<8x128xf32>
    %cst_12 = arith.constant 0.000000e+00 : f32
    %30 = vector.broadcast %cst_12 : f32 to vector<8x128xf32>
    %31 = arith.cmpf oge, %29, %30 : vector<8x128xf32>
    %cst_13 = arith.constant 0.00999999977 : f32
    %32 = vector.broadcast %cst_13 : f32 to vector<8x128xf32>
    %33 = arith.mulf %32, %29 : vector<8x128xf32>
    %34 = arith.select %31, %29, %33 : vector<8x128xi1>, vector<8x128xf32>
    %35 = arith.truncf %34 : vector<8x128xf32> to vector<8x128xbf16>
    %c0_14 = arith.constant 0 : index
    %c0_15 = arith.constant 0 : index
    %36 = vector.load %arg3[%c0_14, %c0_15] : memref<128x128xbf16, #tpu.memory_space<vmem>>, vector<128x128xbf16>
    %cst_16 = arith.constant dense<0.000000e+00> : vector<8x128xf32>
    %37 = tpu.matmul %35, %36, %cst_16 {dimension_numbers = #tpu.dot_dimension_numbers<[1], [0], [0], [1], [0, 0, 1, 1], [], []>} : vector<8x128xbf16>, vector<128x128xbf16>, vector<8x128xf32> -> vector<8x128xf32>
    %c3 = arith.constant 3 : index
    %c0_17 = arith.constant 0 : index
    %38 = vector.load %arg5[%c3, %c0_17] : memref<7x128xf32, #tpu.memory_space<vmem>>, vector<1x128xf32>
    %39 = vector.broadcast %38 : vector<1x128xf32> to vector<8x128xf32>
    %40 = arith.addf %37, %39 : vector<8x128xf32>
    %cst_18 = arith.constant dense<0.000000e+00> : vector<8xf32>
    %41 = vector.multi_reduction <add>, %40, %cst_18 [1] : vector<8x128xf32> to vector<8xf32>
    %42 = vector.shape_cast %41 : vector<8xf32> to vector<8x1xf32>
    %cst_19 = arith.constant 3.125000e-02 : f32
    %43 = vector.broadcast %cst_19 : f32 to vector<8x1xf32>
    %44 = arith.mulf %42, %43 : vector<8x1xf32>
    %45 = arith.mulf %40, %40 : vector<8x128xf32>
    %cst_20 = arith.constant dense<0.000000e+00> : vector<8xf32>
    %46 = vector.multi_reduction <add>, %45, %cst_20 [1] : vector<8x128xf32> to vector<8xf32>
    %47 = vector.shape_cast %46 : vector<8xf32> to vector<8x1xf32>
    %cst_21 = arith.constant 3.125000e-02 : f32
    %48 = vector.broadcast %cst_21 : f32 to vector<8x1xf32>
    %49 = arith.mulf %47, %48 : vector<8x1xf32>
    %50 = arith.mulf %44, %44 : vector<8x1xf32>
    %51 = arith.subf %49, %50 : vector<8x1xf32>
    %52 = vector.broadcast %44 : vector<8x1xf32> to vector<8x128xf32>
    %53 = arith.subf %40, %52 : vector<8x128xf32>
    %cst_22 = arith.constant 9.99999974E-6 : f32
    %54 = vector.broadcast %cst_22 : f32 to vector<8x1xf32>
    %55 = arith.addf %51, %54 : vector<8x1xf32>
    %56 = math.rsqrt %55 : vector<8x1xf32>
    %57 = vector.broadcast %56 : vector<8x1xf32> to vector<8x128xf32>
    %58 = arith.mulf %53, %57 : vector<8x128xf32>
    %c4 = arith.constant 4 : index
    %c0_23 = arith.constant 0 : index
    %59 = vector.load %arg5[%c4, %c0_23] : memref<7x128xf32, #tpu.memory_space<vmem>>, vector<1x128xf32>
    %60 = vector.broadcast %59 : vector<1x128xf32> to vector<8x128xf32>
    %61 = arith.mulf %58, %60 : vector<8x128xf32>
    %c5 = arith.constant 5 : index
    %c0_24 = arith.constant 0 : index
    %62 = vector.load %arg5[%c5, %c0_24] : memref<7x128xf32, #tpu.memory_space<vmem>>, vector<1x128xf32>
    %63 = vector.broadcast %62 : vector<1x128xf32> to vector<8x128xf32>
    %64 = arith.addf %61, %63 : vector<8x128xf32>
    %cst_25 = arith.constant 0.000000e+00 : f32
    %65 = vector.broadcast %cst_25 : f32 to vector<8x128xf32>
    %66 = arith.cmpf oge, %64, %65 : vector<8x128xf32>
    %cst_26 = arith.constant 0.00999999977 : f32
    %67 = vector.broadcast %cst_26 : f32 to vector<8x128xf32>
    %68 = arith.mulf %67, %64 : vector<8x128xf32>
    %69 = arith.select %66, %64, %68 : vector<8x128xi1>, vector<8x128xf32>
    %70 = arith.truncf %69 : vector<8x128xf32> to vector<8x128xbf16>
    %c0_27 = arith.constant 0 : index
    %c0_28 = arith.constant 0 : index
    %71 = vector.load %arg4[%c0_27, %c0_28] : memref<128x128xbf16, #tpu.memory_space<vmem>>, vector<128x128xbf16>
    %cst_29 = arith.constant dense<0.000000e+00> : vector<8x128xf32>
    %72 = tpu.matmul %70, %71, %cst_29 {dimension_numbers = #tpu.dot_dimension_numbers<[1], [0], [0], [1], [0, 0, 1, 1], [], []>} : vector<8x128xbf16>, vector<128x128xbf16>, vector<8x128xf32> -> vector<8x128xf32>
    %c6 = arith.constant 6 : index
    %c0_30 = arith.constant 0 : index
    %73 = vector.load %arg5[%c6, %c0_30] : memref<7x128xf32, #tpu.memory_space<vmem>>, vector<1x128xf32>
    %74 = vector.broadcast %73 : vector<1x128xf32> to vector<8x128xf32>
    %75 = arith.addf %72, %74 : vector<8x128xf32>
    %c0_31 = arith.constant 0 : index
    %c0_32 = arith.constant 0 : index
    %76 = vector.load %arg6[%c0_31, %c0_32] : memref<8x128xf32, #tpu.memory_space<vmem>>, vector<8x128xf32>
    tpu.vector_store %arg6[%c0_31, %c0_32], %75 {strides = array<i32>} : memref<8x128xf32, #tpu.memory_space<vmem>>, vector<8x128xf32>,
    return
  }
  func.func @transform_0(%arg0: i32) -> (i32, i32) {
    %c0_i32 = arith.constant 0 : i32
    %c0_i32_0 = arith.constant 0 : i32
    return %arg0, %c0_i32 : i32, i32
  }
  func.func @transform_1(%arg0: i32) -> (i32, i32) {
    %c0_i32 = arith.constant 0 : i32
    %c0_i32_0 = arith.constant 0 : i32
    %c0_i32_1 = arith.constant 0 : i32
    return %c0_i32, %c0_i32_0 : i32, i32
  }
  func.func @transform_2(%arg0: i32) -> (i32, i32) {
    %c0_i32 = arith.constant 0 : i32
    %c0_i32_0 = arith.constant 0 : i32
    %c0_i32_1 = arith.constant 0 : i32
    return %c0_i32, %c0_i32_0 : i32, i32
  }
  func.func @transform_3(%arg0: i32) -> (i32, i32) {
    %c0_i32 = arith.constant 0 : i32
    %c0_i32_0 = arith.constant 0 : i32
    %c0_i32_1 = arith.constant 0 : i32
    return %c0_i32, %c0_i32_0 : i32, i32
  }
  func.func @transform_4(%arg0: i32) -> (i32, i32) {
    %c0_i32 = arith.constant 0 : i32
    %c0_i32_0 = arith.constant 0 : i32
    %c0_i32_1 = arith.constant 0 : i32
    return %c0_i32, %c0_i32_0 : i32, i32
  }
  func.func @transform_5(%arg0: i32) -> (i32, i32) {
    %c0_i32 = arith.constant 0 : i32
    %c0_i32_0 = arith.constant 0 : i32
    return %arg0, %c0_i32 : i32, i32
  }
}

module attributes {stable_mosaic.version = 11 : i64} {
  func.func @kernel(%arg0: i32, %arg1: memref<8x128xbf16, #tpu.memory_space<vmem>>, %arg2: memref<128x128xbf16, #tpu.memory_space<vmem>>, %arg3: memref<128x128xbf16, #tpu.memory_space<vmem>>, %arg4: memref<128x128xbf16, #tpu.memory_space<vmem>>, %arg5: memref<7x128xf32, #tpu.memory_space<vmem>>, %arg6: memref<8x128xf32, #tpu.memory_space<vmem>>) attributes {dimension_semantics = [#tpu.dimension_semantics<parallel>], iteration_bounds = array<i64: 1>, scalar_prefetch = 0 : i64, scratch_operands = 0 : i64, tpu.core_type = #tpu.core_type<tc>, window_params = [{transform_indices = @transform_0, window_bounds = array<i64: 8, 128>}, {pipeline_mode = #tpu.pipeline_mode<synchronous>, transform_indices = @transform_1, window_bounds = array<i64: 128, 128>}, {pipeline_mode = #tpu.pipeline_mode<synchronous>, transform_indices = @transform_2, window_bounds = array<i64: 128, 128>}, {pipeline_mode = #tpu.pipeline_mode<synchronous>, transform_indices = @transform_3, window_bounds = array<i64: 128, 128>}, {pipeline_mode = #tpu.pipeline_mode<synchronous>, transform_indices = @transform_4, window_bounds = array<i64: 7, 128>}, {transform_indices = @transform_5, window_bounds = array<i64: 8, 128>}]} {
    %c0 = arith.constant 0 : index
    %c0_0 = arith.constant 0 : index
    %0 = vector.load %arg1[%c0, %c0_0] : memref<8x128xbf16, #tpu.memory_space<vmem>>, vector<8x128xbf16>
    %c0_1 = arith.constant 0 : index
    %c0_2 = arith.constant 0 : index
    %1 = vector.load %arg2[%c0_1, %c0_2] : memref<128x128xbf16, #tpu.memory_space<vmem>>, vector<128x128xbf16>
    %cst = arith.constant dense<0.000000e+00> : vector<8x128xf32>
    %2 = tpu.matmul %0, %1, %cst {dimension_numbers = #tpu.dot_dimension_numbers<[1], [0], [0], [1], [0, 0, 1, 1], [], []>} : vector<8x128xbf16>, vector<128x128xbf16>, vector<8x128xf32> -> vector<8x128xf32>
    %c0_3 = arith.constant 0 : index
    %c0_4 = arith.constant 0 : index
    %3 = vector.load %arg5[%c0_3, %c0_4] : memref<7x128xf32, #tpu.memory_space<vmem>>, vector<1x128xf32>
    %4 = vector.broadcast %3 : vector<1x128xf32> to vector<8x128xf32>
    %5 = arith.addf %2, %4 : vector<8x128xf32>
    %cst_5 = arith.constant dense<0.000000e+00> : vector<8xf32>
    %6 = vector.multi_reduction <add>, %5, %cst_5 [1] : vector<8x128xf32> to vector<8xf32>
    %7 = vector.shape_cast %6 : vector<8xf32> to vector<8x1xf32>
    %cst_6 = arith.constant 1.562500e-02 : f32
    %8 = vector.broadcast %cst_6 : f32 to vector<8x1xf32>
    %9 = arith.mulf %7, %8 : vector<8x1xf32>
    %10 = arith.mulf %5, %5 : vector<8x128xf32>
    %cst_7 = arith.constant dense<0.000000e+00> : vector<8xf32>
    %11 = vector.multi_reduction <add>, %10, %cst_7 [1] : vector<8x128xf32> to vector<8xf32>
    %12 = vector.shape_cast %11 : vector<8xf32> to vector<8x1xf32>
    %cst_8 = arith.constant 1.562500e-02 : f32
    %13 = vector.broadcast %cst_8 : f32 to vector<8x1xf32>
    %14 = arith.mulf %12, %13 : vector<8x1xf32>
    %15 = arith.mulf %9, %9 : vector<8x1xf32>
    %16 = arith.subf %14, %15 : vector<8x1xf32>
    %17 = vector.broadcast %9 : vector<8x1xf32> to vector<8x128xf32>
    %18 = arith.subf %5, %17 : vector<8x128xf32>
    %cst_9 = arith.constant 9.99999974E-6 : f32
    %19 = vector.broadcast %cst_9 : f32 to vector<8x1xf32>
    %20 = arith.addf %16, %19 : vector<8x1xf32>
    %21 = math.rsqrt %20 : vector<8x1xf32>
    %22 = vector.broadcast %21 : vector<8x1xf32> to vector<8x128xf32>
    %23 = arith.mulf %18, %22 : vector<8x128xf32>
    %c1 = arith.constant 1 : index
    %c0_10 = arith.constant 0 : index
    %24 = vector.load %arg5[%c1, %c0_10] : memref<7x128xf32, #tpu.memory_space<vmem>>, vector<1x128xf32>
    %25 = vector.broadcast %24 : vector<1x128xf32> to vector<8x128xf32>
    %26 = arith.mulf %23, %25 : vector<8x128xf32>
    %c2 = arith.constant 2 : index
    %c0_11 = arith.constant 0 : index
    %27 = vector.load %arg5[%c2, %c0_11] : memref<7x128xf32, #tpu.memory_space<vmem>>, vector<1x128xf32>
    %28 = vector.broadcast %27 : vector<1x128xf32> to vector<8x128xf32>
    %29 = arith.addf %26, %28 : vector<8x128xf32>
    %cst_12 = arith.constant 0.000000e+00 : f32
    %30 = vector.broadcast %cst_12 : f32 to vector<8x128xf32>
    %31 = arith.cmpf oge, %29, %30 : vector<8x128xf32>
    %cst_13 = arith.constant 0.00999999977 : f32
    %32 = vector.broadcast %cst_13 : f32 to vector<8x128xf32>
    %33 = arith.mulf %32, %29 : vector<8x128xf32>
    %34 = arith.select %31, %29, %33 : vector<8x128xi1>, vector<8x128xf32>
    %35 = arith.truncf %34 : vector<8x128xf32> to vector<8x128xbf16>
    %c0_14 = arith.constant 0 : index
    %c0_15 = arith.constant 0 : index
    %36 = vector.load %arg3[%c0_14, %c0_15] : memref<128x128xbf16, #tpu.memory_space<vmem>>, vector<128x128xbf16>
    %cst_16 = arith.constant dense<0.000000e+00> : vector<8x128xf32>
    %37 = tpu.matmul %35, %36, %cst_16 {dimension_numbers = #tpu.dot_dimension_numbers<[1], [0], [0], [1], [0, 0, 1, 1], [], []>} : vector<8x128xbf16>, vector<128x128xbf16>, vector<8x128xf32> -> vector<8x128xf32>
    %c3 = arith.constant 3 : index
    %c0_17 = arith.constant 0 : index
    %38 = vector.load %arg5[%c3, %c0_17] : memref<7x128xf32, #tpu.memory_space<vmem>>, vector<1x128xf32>
    %39 = vector.broadcast %38 : vector<1x128xf32> to vector<8x128xf32>
    %40 = arith.addf %37, %39 : vector<8x128xf32>
    %cst_18 = arith.constant dense<0.000000e+00> : vector<8xf32>
    %41 = vector.multi_reduction <add>, %40, %cst_18 [1] : vector<8x128xf32> to vector<8xf32>
    %42 = vector.shape_cast %41 : vector<8xf32> to vector<8x1xf32>
    %cst_19 = arith.constant 3.125000e-02 : f32
    %43 = vector.broadcast %cst_19 : f32 to vector<8x1xf32>
    %44 = arith.mulf %42, %43 : vector<8x1xf32>
    %45 = arith.mulf %40, %40 : vector<8x128xf32>
    %cst_20 = arith.constant dense<0.000000e+00> : vector<8xf32>
    %46 = vector.multi_reduction <add>, %45, %cst_20 [1] : vector<8x128xf32> to vector<8xf32>
    %47 = vector.shape_cast %46 : vector<8xf32> to vector<8x1xf32>
    %cst_21 = arith.constant 3.125000e-02 : f32
    %48 = vector.broadcast %cst_21 : f32 to vector<8x1xf32>
    %49 = arith.mulf %47, %48 : vector<8x1xf32>
    %50 = arith.mulf %44, %44 : vector<8x1xf32>
    %51 = arith.subf %49, %50 : vector<8x1xf32>
    %52 = vector.broadcast %44 : vector<8x1xf32> to vector<8x128xf32>
    %53 = arith.subf %40, %52 : vector<8x128xf32>
    %cst_22 = arith.constant 9.99999974E-6 : f32
    %54 = vector.broadcast %cst_22 : f32 to vector<8x1xf32>
    %55 = arith.addf %51, %54 : vector<8x1xf32>
    %56 = math.rsqrt %55 : vector<8x1xf32>
    %57 = vector.broadcast %56 : vector<8x1xf32> to vector<8x128xf32>
    %58 = arith.mulf %53, %57 : vector<8x128xf32>
    %c4 = arith.constant 4 : index
    %c0_23 = arith.constant 0 : index
    %59 = vector.load %arg5[%c4, %c0_23] : memref<7x128xf32, #tpu.memory_space<vmem>>, vector<1x128xf32>
    %60 = vector.broadcast %59 : vector<1x128xf32> to vector<8x128xf32>
    %61 = arith.mulf %58, %60 : vector<8x128xf32>
    %c5 = arith.constant 5 : index
    %c0_24 = arith.constant 0 : index
    %62 = vector.load %arg5[%c5, %c0_24] : memref<7x128xf32, #tpu.memory_space<vmem>>, vector<1x128xf32>
    %63 = vector.broadcast %62 : vector<1x128xf32> to vector<8x128xf32>
    %64 = arith.addf %61, %63 : vector<8x128xf32>
    %cst_25 = arith.constant 0.000000e+00 : f32
    %65 = vector.broadcast %cst_25 : f32 to vector<8x128xf32>
    %66 = arith.cmpf oge, %64, %65 : vector<8x128xf32>
    %cst_26 = arith.constant 0.00999999977 : f32
    %67 = vector.broadcast %cst_26 : f32 to vector<8x128xf32>
    %68 = arith.mulf %67, %64 : vector<8x128xf32>
    %69 = arith.select %66, %64, %68 : vector<8x128xi1>, vector<8x128xf32>
    %70 = arith.truncf %69 : vector<8x128xf32> to vector<8x128xbf16>
    %c0_27 = arith.constant 0 : index
    %c0_28 = arith.constant 0 : index
    %71 = vector.load %arg4[%c0_27, %c0_28] : memref<128x128xbf16, #tpu.memory_space<vmem>>, vector<128x128xbf16>
    %cst_29 = arith.constant dense<0.000000e+00> : vector<8x128xf32>
    %72 = tpu.matmul %70, %71, %cst_29 {dimension_numbers = #tpu.dot_dimension_numbers<[1], [0], [0], [1], [0, 0, 1, 1], [], []>} : vector<8x128xbf16>, vector<128x128xbf16>, vector<8x128xf32> -> vector<8x128xf32>
    %c6 = arith.constant 6 : index
    %c0_30 = arith.constant 0 : index
    %73 = vector.load %arg5[%c6, %c0_30] : memref<7x128xf32, #tpu.memory_space<vmem>>, vector<1x128xf32>
    %74 = vector.broadcast %73 : vector<1x128xf32> to vector<8x128xf32>
    %75 = arith.addf %72, %74 : vector<8x128xf32>
    %c0_31 = arith.constant 0 : index
    %c0_32 = arith.constant 0 : index
    %76 = vector.load %arg6[%c0_31, %c0_32] : memref<8x128xf32, #tpu.memory_space<vmem>>, vector<8x128xf32>
    tpu.vector_store %arg6[%c0_31, %c0_32], %75 {strides = array<i32>} : memref<8x128xf32, #tpu.memory_space<vmem>>, vector<8x128xf32>,
    return
  }
  func.func @transform_0(%arg0: i32) -> (i32, i32) {
    %c0_i32 = arith.constant 0 : i32
    %c0_i32_0 = arith.constant 0 : i32
    return %arg0, %c0_i32 : i32, i32
  }
  func.func @transform_1(%arg0: i32) -> (i32, i32) {
    %c0_i32 = arith.constant 0 : i32
    %c0_i32_0 = arith.constant 0 : i32
    %c0_i32_1 = arith.constant 0 : i32
    return %c0_i32, %c0_i32_0 : i32, i32
  }
  func.func @transform_2(%arg0: i32) -> (i32, i32) {
    %c0_i32 = arith.constant 0 : i32
    %c0_i32_0 = arith.constant 0 : i32
    %c0_i32_1 = arith.constant 0 : i32
    return %c0_i32, %c0_i32_0 : i32, i32
  }
  func.func @transform_3(%arg0: i32) -> (i32, i32) {
    %c0_i32 = arith.constant 0 : i32
    %c0_i32_0 = arith.constant 0 : i32
    %c0_i32_1 = arith.constant 0 : i32
    return %c0_i32, %c0_i32_0 : i32, i32
  }
  func.func @transform_4(%arg0: i32) -> (i32, i32) {
    %c0_i32 = arith.constant 0 : i32
    %c0_i32_0 = arith.constant 0 : i32
    %c0_i32_1 = arith.constant 0 : i32
    return %c0_i32, %c0_i32_0 : i32, i32
  }
  func.func @transform_5(%arg0: i32) -> (i32, i32) {
    %c0_i32 = arith.constant 0 : i32
    %c0_i32_0 = arith.constant 0 : i32
    return %arg0, %c0_i32 : i32, i32
  }
}

</mosaic_0001>

<llo_original>
// kernel: _ffnn_forward_jit.1
$region0: #{_ffnn_forward_jit.1}
  #allocation0 [shape = 'u32[]', space=smem, size = 0x4, offset = 0x4, fixed_abs, tag = 'smem constant byte address 0x4 - core index']
  #allocation1 [shape = 'u32[144,128]{1,0:T(1,128)}', space=vmem, size = 0x12000, scoped, tag = 'internal scratch']
  %s0 = inlined_call_operand.vmem [shape: bf16[8,128], index: 0, kind: input, shape index: {}]
  %s1 = inlined_call_operand.hbm [shape: bf16[128,128], index: 1, kind: input, shape index: {}]
  %s2 = inlined_call_operand.hbm [shape: bf16[128,128], index: 2, kind: input, shape index: {}]
  %s3 = inlined_call_operand.hbm [shape: bf16[128,128], index: 3, kind: input, shape index: {}]
  %s4 = inlined_call_operand.vmem [shape: f32[7,128], index: 4, kind: input, shape index: {}]
  %s5 = inlined_call_operand.hbm [shape: f32[8,128], index: 5, kind: output, shape index: {}]
  %s6 = sld [smem:[#allocation0]]
  $region42: #{_ffnn_forward_jit.1} parent=0
    _
  %s8 = ssub.s32 1, %s6
  %s9 = scalar_select 0, %s8, %s6
  $region1: #{_ffnn_forward_jit.1} parent=0
    #allocation2 [shape = 'u8[32768]{0}', space=vmem, size = 0x8000, scoped, tag = 'input window, operand 1, single buffered']
    #allocation3 [shape = 's32[1]{0}', space=sflag, size = 0x4, scoped, tag = 'scoped memory for _ffnn_forward_jit.1']
    #allocation4 [shape = 's32[1]{0}', space=sflag, size = 0x4, scoped, tag = 'scoped memory for _ffnn_forward_jit.1']
    #allocation5 [shape = 'u8[32768]{0}', space=vmem, size = 0x8000, scoped, tag = 'input window, operand 2, single buffered']
    #allocation6 [shape = 's32[1]{0}', space=sflag, size = 0x4, scoped, tag = 'scoped memory for _ffnn_forward_jit.1']
    #allocation7 [shape = 'u8[32768]{0}', space=vmem, size = 0x8000, scoped, tag = 'input window, operand 3, single buffered']
    #allocation8 [shape = 'u8[4096]{0}', space=vmem, size = 0x1000, scoped, tag = 'output window, operand 0, single buffered']
    %10 = vsyncpa [#allocation3], 0
    %11 = vsyncpa [#allocation6], 0
    %12 = vsyncpa [#allocation4], 0
    // Predicated region
    $region2: #{_ffnn_forward_jit.1} parent=1 // pred_check
      _
    $region3: #{_ffnn_forward_jit.1} parent=1 // pred_check_branch
      %14 = sbr.rel (0) target = $region5
    $region4: #{_ffnn_forward_jit.1} parent=1 // pred_region
      _
    $region5: #{_ffnn_forward_jit.1} parent=1 // pred_fallthru
      _
    // Predicated region
    $region6: #{_ffnn_forward_jit.1} parent=1 // pred_check
      _
    $region7: #{_ffnn_forward_jit.1} parent=1 // pred_check_branch
      %16 = sbr.rel (0) target = $region9
    $region8: #{_ffnn_forward_jit.1} parent=1 // pred_region
      %s18 = ssub.s32 1024, 1024
      %19 = vsyncadd [#allocation3], %s18
      %s20 = sshll.u32 [#allocation2], 4
      %s21 = int_to_ptr.vmem [resolvable:$true] %s20
      %26 = dma.hbm_to_vmem [thread:$0]  %s1, 1024, %s21, [#allocation3], 64, 64, 4
    $region9: #{_ffnn_forward_jit.1} parent=1 // pred_fallthru
      _
    // Predicated region
    $region10: #{_ffnn_forward_jit.1} parent=1 // pred_check
      _
    $region11: #{_ffnn_forward_jit.1} parent=1 // pred_check_branch
      %28 = sbr.rel (0) target = $region13
    $region12: #{_ffnn_forward_jit.1} parent=1 // pred_region
      %s30 = ssub.s32 1024, 1024
      %31 = vsyncadd [#allocation6], %s30
      %s32 = sshll.u32 [#allocation5], 4
      %s33 = int_to_ptr.vmem [resolvable:$true] %s32
      %38 = dma.hbm_to_vmem [thread:$0]  %s2, 1024, %s33, [#allocation6], 64, 64, 4
    $region13: #{_ffnn_forward_jit.1} parent=1 // pred_fallthru
      _
    // Predicated region
    $region14: #{_ffnn_forward_jit.1} parent=1 // pred_check
      _
    $region15: #{_ffnn_forward_jit.1} parent=1 // pred_check_branch
      %40 = sbr.rel (0) target = $region17
    $region16: #{_ffnn_forward_jit.1} parent=1 // pred_region
      %s42 = ssub.s32 1024, 1024
      %43 = vsyncadd [#allocation6], %s42
      %s44 = sshll.u32 [#allocation7], 4
      %s45 = int_to_ptr.vmem [resolvable:$true] %s44
      %50 = dma.hbm_to_vmem [thread:$0]  %s3, 1024, %s45, [#allocation6], 64, 64, 4
    $region17: #{_ffnn_forward_jit.1} parent=1 // pred_fallthru
      _
    // Predicated region
    $region18: #{_ffnn_forward_jit.1} parent=1 // pred_check
      _
    $region19: #{_ffnn_forward_jit.1} parent=1 // pred_check_branch
      %52 = sbr.rel (0) target = $region21
    $region20: #{_ffnn_forward_jit.1} parent=1 // pred_region
      _
    $region21: #{_ffnn_forward_jit.1} parent=1 // pred_fallthru
      _
    // Predicated region
    $region22: #{_ffnn_forward_jit.1} parent=1 // pred_check
      _
    $region23: #{_ffnn_forward_jit.1} parent=1 // pred_check_branch
      %54 = sbr.rel (0) target = $region25
    $region24: #{_ffnn_forward_jit.1} parent=1 // pred_region
      %55 = dma.done [#allocation3], 1024
    $region25: #{_ffnn_forward_jit.1} parent=1 // pred_fallthru
      _
    // Predicated region
    $region26: #{_ffnn_forward_jit.1} parent=1 // pred_check
      _
    $region27: #{_ffnn_forward_jit.1} parent=1 // pred_check_branch
      %57 = sbr.rel (0) target = $region29
    $region28: #{_ffnn_forward_jit.1} parent=1 // pred_region
      %58 = dma.done [#allocation6], 1024
    $region29: #{_ffnn_forward_jit.1} parent=1 // pred_fallthru
      _
    // Predicated region
    $region30: #{_ffnn_forward_jit.1} parent=1 // pred_check
      _
    $region31: #{_ffnn_forward_jit.1} parent=1 // pred_check_branch
      %60 = sbr.rel (0) target = $region33
    $region32: #{_ffnn_forward_jit.1} parent=1 // pred_region
      %61 = dma.done [#allocation6], 1024
    $region33: #{_ffnn_forward_jit.1} parent=1 // pred_fallthru
      _
    %v63 = vld [vmem:[%s0] sm:$0xf]
    %v64 = vld [vmem:[#allocation2] sm:$0xf]
    %v65 = vld [vmem:[#allocation2 + $0x4] sm:$0xf]
    %v66 = vld [vmem:[#allocation2 + $0x8] sm:$0xf]
    %v67 = vld [vmem:[#allocation2 + $0xc] sm:$0xf]
    %v68 = vld [vmem:[#allocation2 + $0x10] sm:$0xf]
    %v69 = vld [vmem:[#allocation2 + $0x14] sm:$0xf]
    %v70 = vld [vmem:[#allocation2 + $0x18] sm:$0xf]
    %v71 = vld [vmem:[#allocation2 + $0x1c] sm:$0xf]
    %v72 = vld [vmem:[#allocation2 + $0x20] sm:$0xf]
    %v73 = vld [vmem:[#allocation2 + $0x24] sm:$0xf]
    %v74 = vld [vmem:[#allocation2 + $0x28] sm:$0xf]
    %v75 = vld [vmem:[#allocation2 + $0x2c] sm:$0xf]
    %v76 = vld [vmem:[#allocation2 + $0x30] sm:$0xf]
    %v77 = vld [vmem:[#allocation2 + $0x34] sm:$0xf]
    %v78 = vld [vmem:[#allocation2 + $0x38] sm:$0xf]
    %v79 = vld [vmem:[#allocation2 + $0x3c] sm:$0xf]
    %v80 = vld [vmem:[%s4] sm:$0x1]
    %v81 = vlaneseq
    %v82 = vshrl.u32 %v81, 7
    %v83 = vsub.s32 0, %v82
    %v84 = vrot.slane %v80, %v83
    %v101 = vunpack.c.l.b16 %v64
    %v102 = vunpack.c.l.b16 %v65
    %v103 = vunpack.c.l.b16 %v66
    %v104 = vunpack.c.l.b16 %v67
    %v105 = vunpack.c.l.b16 %v68
    %v106 = vunpack.c.l.b16 %v69
    %v107 = vunpack.c.l.b16 %v70
    %v108 = vunpack.c.l.b16 %v71
    %v109 = vunpack.c.l.b16 %v72
    %v110 = vunpack.c.l.b16 %v73
    %v111 = vunpack.c.l.b16 %v74
    %v112 = vunpack.c.l.b16 %v75
    %v113 = vunpack.c.l.b16 %v76
    %v114 = vunpack.c.l.b16 %v77
    %v115 = vunpack.c.l.b16 %v78
    %v116 = vunpack.c.l.b16 %v79
    %v117 = vpack.c.b16 %v102, %v101
    %v118 = vpack.c.b16 %v104, %v103
    %v119 = vpack.c.b16 %v106, %v105
    %v120 = vpack.c.b16 %v108, %v107
    %v121 = vpack.c.b16 %v110, %v109
    %v122 = vpack.c.b16 %v112, %v111
    %v123 = vpack.c.b16 %v114, %v113
    %v124 = vpack.c.b16 %v116, %v115
    %133 = vmatprep.subr.bf16.mxu0 0
    %134 = vmatpush1.bf16.msra.mxu0 %v117
    %135 = vmatprep.subr.bf16.mxu0 0
    %136 = vmatpush1.bf16.msra.mxu0 %v118
    %137 = vmatprep.subr.bf16.mxu0 0
    %138 = vmatpush1.bf16.msra.mxu0 %v119
    %139 = vmatprep.subr.bf16.mxu0 0
    %140 = vmatpush1.bf16.msra.mxu0 %v120
    %141 = vmatprep.subr.bf16.mxu0 0
    %142 = vmatpush1.bf16.msra.mxu0 %v121
    %143 = vmatprep.subr.bf16.mxu0 0
    %144 = vmatpush1.bf16.msra.mxu0 %v122
    %145 = vmatprep.subr.bf16.mxu0 0
    %146 = vmatpush1.bf16.msra.mxu0 %v123
    %147 = vmatprep.subr.bf16.mxu0 0
    %148 = vmatpush1.bf16.msra.mxu0 %v124
    %149 = vmatprep.subr.bf16.mxu0 0
    %150 = vmatpush1.bf16.msra.mxu0 0
    %151 = vmatprep.subr.bf16.mxu0 0
    %152 = vmatpush1.bf16.msra.mxu0 0
    %153 = vmatprep.subr.bf16.mxu0 0
    %154 = vmatpush1.bf16.msra.mxu0 0
    %155 = vmatprep.subr.bf16.mxu0 0
    %156 = vmatpush1.bf16.msra.mxu0 0
    %157 = vmatprep.subr.bf16.mxu0 0
    %158 = vmatpush1.bf16.msra.mxu0 0
    %159 = vmatprep.subr.bf16.mxu0 0
    %160 = vmatpush1.bf16.msra.mxu0 0
    %161 = vmatprep.subr.bf16.mxu0 0
    %162 = vmatpush1.bf16.msra.mxu0 0
    %163 = vmatprep.subr.bf16.mxu0 0
    %164 = vmatpush1.bf16.msra.mxu0 0
    %165 = vmatprep.mubr.bf16.mxu0 0
    %166 = vmatmul.mubr.bf16.gmra.mrb[0].mxu0 %v63
    %v167 = vpop.f32.mrb[0].mxu0
    %v168 = vadd.f32 %v84, %v167
    %v169 = vpop.f32.mrb[0].mxu0
    %v170 = vpop.f32.mrb[0].mxu0
    %v171 = vpop.f32.mrb[0].mxu0
    %172 = vdwg.mxu0
    %173 = vadd.xlane.f32.xlu0 %v168
    %v174 = vpop.xlane.xlu0 %173
    %v175 = vmul.f32 %v174, 0.015625
    %v176 = vmul.f32 %v168, %v168
    %177 = vadd.xlane.f32.xlu0 %v176
    %v178 = vpop.xlane.xlu0 %177
    %v179 = vmul.f32 %v178, 0.015625
    %v180 = vmul.f32 %v175, %v175
    %v181 = vsub.f32 %v179, %v180
    %v182 = vsub.f32 %v168, %v175
    %v183 = vadd.f32 %v181, 1e-05
    %v184 = vrsqrt.pop %v183
    %v185 = vmul.f32 %v182, %v184
    %v186 = vld [vmem:[%s4 + $0x1] sm:$0x1]
    %v187 = vlaneseq
    %v188 = vshrl.u32 %v187, 7
    %v189 = vsub.s32 0, %v188
    %v190 = vrot.slane %v186, %v189
    %v191 = vmul.f32 %v185, %v190
    %v192 = vld [vmem:[%s4 + $0x2] sm:$0x1]
    %v193 = vlaneseq
    %v194 = vshrl.u32 %v193, 7
    %v195 = vsub.s32 0, %v194
    %v196 = vrot.slane %v192, %v195
    %v197 = vadd.f32 %v191, %v196
    %vm198 = vcmp.ge.f32.partialorder %v197, 0.0
    %v199 = vmul.f32 %v197, 0.01
    %v200 = vsel %vm198, %v197, %v199
    %v201 = vpack.c.bf16 %v200, %v200
    %v202 = vld [vmem:[#allocation5] sm:$0xf]
    %v203 = vld [vmem:[#allocation5 + $0x4] sm:$0xf]
    %v204 = vld [vmem:[#allocation5 + $0x8] sm:$0xf]
    %v205 = vld [vmem:[#allocation5 + $0xc] sm:$0xf]
    %v206 = vld [vmem:[#allocation5 + $0x10] sm:$0xf]
    %v207 = vld [vmem:[#allocation5 + $0x14] sm:$0xf]
    %v208 = vld [vmem:[#allocation5 + $0x18] sm:$0xf]
    %v209 = vld [vmem:[#allocation5 + $0x1c] sm:$0xf]
    %v210 = vld [vmem:[#allocation5 + $0x20] sm:$0xf]
    %v211 = vld [vmem:[#allocation5 + $0x24] sm:$0xf]
    %v212 = vld [vmem:[#allocation5 + $0x28] sm:$0xf]
    %v213 = vld [vmem:[#allocation5 + $0x2c] sm:$0xf]
    %v214 = vld [vmem:[#allocation5 + $0x30] sm:$0xf]
    %v215 = vld [vmem:[#allocation5 + $0x34] sm:$0xf]
    %v216 = vld [vmem:[#allocation5 + $0x38] sm:$0xf]
    %v217 = vld [vmem:[#allocation5 + $0x3c] sm:$0xf]
    %v218 = vld [vmem:[%s4 + $0x3] sm:$0x1]
    %v219 = vlaneseq
    %v220 = vshrl.u32 %v219, 7
    %v221 = vsub.s32 0, %v220
    %v222 = vrot.slane %v218, %v221
    %v239 = vunpack.c.l.b16 %v202
    %v240 = vunpack.c.l.b16 %v203
    %v241 = vunpack.c.l.b16 %v204
    %v242 = vunpack.c.l.b16 %v205
    %v243 = vunpack.c.l.b16 %v206
    %v244 = vunpack.c.l.b16 %v207
    %v245 = vunpack.c.l.b16 %v208
    %v246 = vunpack.c.l.b16 %v209
    %v247 = vunpack.c.l.b16 %v210
    %v248 = vunpack.c.l.b16 %v211
    %v249 = vunpack.c.l.b16 %v212
    %v250 = vunpack.c.l.b16 %v213
    %v251 = vunpack.c.l.b16 %v214
    %v252 = vunpack.c.l.b16 %v215
    %v253 = vunpack.c.l.b16 %v216
    %v254 = vunpack.c.l.b16 %v217
    %v255 = vpack.c.b16 %v240, %v239
    %v256 = vpack.c.b16 %v242, %v241
    %v257 = vpack.c.b16 %v244, %v243
    %v258 = vpack.c.b16 %v246, %v245
    %v259 = vpack.c.b16 %v248, %v247
    %v260 = vpack.c.b16 %v250, %v249
    %v261 = vpack.c.b16 %v252, %v251
    %v262 = vpack.c.b16 %v254, %v253
    %271 = vmatprep.subr.bf16.mxu0 0
    %272 = vmatpush1.bf16.msra.mxu0 %v255
    %273 = vmatprep.subr.bf16.mxu0 0
    %274 = vmatpush1.bf16.msra.mxu0 %v256
    %275 = vmatprep.subr.bf16.mxu0 0
    %276 = vmatpush1.bf16.msra.mxu0 %v257
    %277 = vmatprep.subr.bf16.mxu0 0
    %278 = vmatpush1.bf16.msra.mxu0 %v258
    %279 = vmatprep.subr.bf16.mxu0 0
    %280 = vmatpush1.bf16.msra.mxu0 %v259
    %281 = vmatprep.subr.bf16.mxu0 0
    %282 = vmatpush1.bf16.msra.mxu0 %v260
    %283 = vmatprep.subr.bf16.mxu0 0
    %284 = vmatpush1.bf16.msra.mxu0 %v261
    %285 = vmatprep.subr.bf16.mxu0 0
    %286 = vmatpush1.bf16.msra.mxu0 %v262
    %287 = vmatprep.subr.bf16.mxu0 0
    %288 = vmatpush1.bf16.msra.mxu0 0
    %289 = vmatprep.subr.bf16.mxu0 0
    %290 = vmatpush1.bf16.msra.mxu0 0
    %291 = vmatprep.subr.bf16.mxu0 0
    %292 = vmatpush1.bf16.msra.mxu0 0
    %293 = vmatprep.subr.bf16.mxu0 0
    %294 = vmatpush1.bf16.msra.mxu0 0
    %295 = vmatprep.subr.bf16.mxu0 0
    %296 = vmatpush1.bf16.msra.mxu0 0
    %297 = vmatprep.subr.bf16.mxu0 0
    %298 = vmatpush1.bf16.msra.mxu0 0
    %299 = vmatprep.subr.bf16.mxu0 0
    %300 = vmatpush1.bf16.msra.mxu0 0
    %301 = vmatprep.subr.bf16.mxu0 0
    %302 = vmatpush1.bf16.msra.mxu0 0
    %303 = vmatprep.mubr.bf16.mxu0 0
    %304 = vmatmul.mubr.bf16.gmra.mrb[0].mxu0 %v201
    %v305 = vpop.f32.mrb[0].mxu0
    %v306 = vadd.f32 %v222, %v305
    %v307 = vpop.f32.mrb[0].mxu0
    %v308 = vpop.f32.mrb[0].mxu0
    %v309 = vpop.f32.mrb[0].mxu0
    %310 = vdwg.mxu0
    %311 = vadd.xlane.f32.xlu0 %v306
    %v312 = vpop.xlane.xlu0 %311
    %v313 = vmul.f32 %v312, 0.03125
    %v314 = vmul.f32 %v306, %v306
    %315 = vadd.xlane.f32.xlu0 %v314
    %v316 = vpop.xlane.xlu0 %315
    %v317 = vmul.f32 %v316, 0.03125
    %v318 = vmul.f32 %v313, %v313
    %v319 = vsub.f32 %v317, %v318
    %v320 = vsub.f32 %v306, %v313
    %v321 = vadd.f32 %v319, 1e-05
    %v322 = vrsqrt.pop %v321
    %v323 = vmul.f32 %v320, %v322
    %v324 = vld [vmem:[%s4 + $0x4] sm:$0x1]
    %v325 = vlaneseq
    %v326 = vshrl.u32 %v325, 7
    %v327 = vsub.s32 0, %v326
    %v328 = vrot.slane %v324, %v327
    %v329 = vmul.f32 %v323, %v328
    %v330 = vld [vmem:[%s4 + $0x5] sm:$0x1]
    %v331 = vlaneseq
    %v332 = vshrl.u32 %v331, 7
    %v333 = vsub.s32 0, %v332
    %v334 = vrot.slane %v330, %v333
    %v335 = vadd.f32 %v329, %v334
    %vm336 = vcmp.ge.f32.partialorder %v335, 0.0
    %v337 = vmul.f32 %v335, 0.01
    %v338 = vsel %vm336, %v335, %v337
    %v339 = vpack.c.bf16 %v338, %v338
    %v340 = vld [vmem:[#allocation7] sm:$0xf]
    %v341 = vld [vmem:[#allocation7 + $0x4] sm:$0xf]
    %v342 = vld [vmem:[#allocation7 + $0x8] sm:$0xf]
    %v343 = vld [vmem:[#allocation7 + $0xc] sm:$0xf]
    %v344 = vld [vmem:[#allocation7 + $0x10] sm:$0xf]
    %v345 = vld [vmem:[#allocation7 + $0x14] sm:$0xf]
    %v346 = vld [vmem:[#allocation7 + $0x18] sm:$0xf]
    %v347 = vld [vmem:[#allocation7 + $0x1c] sm:$0xf]
    %v348 = vld [vmem:[#allocation7 + $0x20] sm:$0xf]
    %v349 = vld [vmem:[#allocation7 + $0x24] sm:$0xf]
    %v350 = vld [vmem:[#allocation7 + $0x28] sm:$0xf]
    %v351 = vld [vmem:[#allocation7 + $0x2c] sm:$0xf]
    %v352 = vld [vmem:[#allocation7 + $0x30] sm:$0xf]
    %v353 = vld [vmem:[#allocation7 + $0x34] sm:$0xf]
    %v354 = vld [vmem:[#allocation7 + $0x38] sm:$0xf]
    %v355 = vld [vmem:[#allocation7 + $0x3c] sm:$0xf]
    %v356 = vld [vmem:[%s4 + $0x6] sm:$0x1]
    %v357 = vlaneseq
    %v358 = vshrl.u32 %v357, 7
    %v359 = vsub.s32 0, %v358
    %v360 = vrot.slane %v356, %v359
    %v377 = vunpack.c.l.b16 %v340
    %v378 = vunpack.c.l.b16 %v341
    %v379 = vunpack.c.l.b16 %v342
    %v380 = vunpack.c.l.b16 %v343
    %v381 = vunpack.c.l.b16 %v344
    %v382 = vunpack.c.l.b16 %v345
    %v383 = vunpack.c.l.b16 %v346
    %v384 = vunpack.c.l.b16 %v347
    %v385 = vunpack.c.l.b16 %v348
    %v386 = vunpack.c.l.b16 %v349
    %v387 = vunpack.c.l.b16 %v350
    %v388 = vunpack.c.l.b16 %v351
    %v389 = vunpack.c.l.b16 %v352
    %v390 = vunpack.c.l.b16 %v353
    %v391 = vunpack.c.l.b16 %v354
    %v392 = vunpack.c.l.b16 %v355
    %v393 = vpack.c.b16 %v378, %v377
    %v394 = vpack.c.b16 %v380, %v379
    %v395 = vpack.c.b16 %v382, %v381
    %v396 = vpack.c.b16 %v384, %v383
    %v397 = vpack.c.b16 %v386, %v385
    %v398 = vpack.c.b16 %v388, %v387
    %v399 = vpack.c.b16 %v390, %v389
    %v400 = vpack.c.b16 %v392, %v391
    %409 = vmatprep.subr.bf16.mxu0 0
    %410 = vmatpush1.bf16.msra.mxu0 %v393
    %411 = vmatprep.subr.bf16.mxu0 0
    %412 = vmatpush1.bf16.msra.mxu0 %v394
    %413 = vmatprep.subr.bf16.mxu0 0
    %414 = vmatpush1.bf16.msra.mxu0 %v395
    %415 = vmatprep.subr.bf16.mxu0 0
    %416 = vmatpush1.bf16.msra.mxu0 %v396
    %417 = vmatprep.subr.bf16.mxu0 0
    %418 = vmatpush1.bf16.msra.mxu0 %v397
    %419 = vmatprep.subr.bf16.mxu0 0
    %420 = vmatpush1.bf16.msra.mxu0 %v398
    %421 = vmatprep.subr.bf16.mxu0 0
    %422 = vmatpush1.bf16.msra.mxu0 %v399
    %423 = vmatprep.subr.bf16.mxu0 0
    %424 = vmatpush1.bf16.msra.mxu0 %v400
    %425 = vmatprep.subr.bf16.mxu0 0
    %426 = vmatpush1.bf16.msra.mxu0 0
    %427 = vmatprep.subr.bf16.mxu0 0
    %428 = vmatpush1.bf16.msra.mxu0 0
    %429 = vmatprep.subr.bf16.mxu0 0
    %430 = vmatpush1.bf16.msra.mxu0 0
    %431 = vmatprep.subr.bf16.mxu0 0
    %432 = vmatpush1.bf16.msra.mxu0 0
    %433 = vmatprep.subr.bf16.mxu0 0
    %434 = vmatpush1.bf16.msra.mxu0 0
    %435 = vmatprep.subr.bf16.mxu0 0
    %436 = vmatpush1.bf16.msra.mxu0 0
    %437 = vmatprep.subr.bf16.mxu0 0
    %438 = vmatpush1.bf16.msra.mxu0 0
    %439 = vmatprep.subr.bf16.mxu0 0
    %440 = vmatpush1.bf16.msra.mxu0 0
    %441 = vmatprep.mubr.bf16.mxu0 0
    %442 = vmatmul.mubr.bf16.gmra.mrb[0].mxu0 %v339
    %v443 = vpop.f32.mrb[0].mxu0
    %v444 = vadd.f32 %v360, %v443
    %v445 = vpop.f32.mrb[0].mxu0
    %v446 = vpop.f32.mrb[0].mxu0
    %v447 = vpop.f32.mrb[0].mxu0
    %448 = vdwg.mxu0
    %449 = vst [vmem:[#allocation8] sm:$0xff] %v444
    // Predicated region
    $region34: #{_ffnn_forward_jit.1} parent=1 // pred_check
      _
    $region35: #{_ffnn_forward_jit.1} parent=1 // pred_check_branch
      %451 = sbr.rel (0) target = $region37
    $region36: #{_ffnn_forward_jit.1} parent=1 // pred_region
      %s453 = ssub.s32 128, 128
      %454 = vsyncadd [#allocation4], %s453
      %s456 = sshll.u32 [#allocation8], 4
      %s457 = int_to_ptr.vmem [resolvable:$true] %s456
      %459 = dma.vmem_to_hbm [thread:$0]  %s457, 128, %s5, [#allocation4]
    $region37: #{_ffnn_forward_jit.1} parent=1 // pred_fallthru
      _
    // Predicated region
    $region38: #{_ffnn_forward_jit.1} parent=1 // pred_check
      _
    $region39: #{_ffnn_forward_jit.1} parent=1 // pred_check_branch
      %461 = sbr.rel (0) target = $region41
    $region40: #{_ffnn_forward_jit.1} parent=1 // pred_region
      %462 = dma.done [#allocation4], 128
    $region41: #{_ffnn_forward_jit.1} parent=1 // pred_fallthru
      _
    %463 = vsyncpa [#allocation3], 1
    %464 = vsyncpa [#allocation6], 1
    %465 = vsyncpa [#allocation4], 1

// kernel: _ffnn_forward_jit.1
$region0: #{_ffnn_forward_jit.1}
  #allocation0 [shape = 'u32[]', space=smem, size = 0x4, offset = 0x4, fixed_abs, tag = 'smem constant byte address 0x4 - core index']
  #allocation1 [shape = 'u32[144,128]{1,0:T(1,128)}', space=vmem, size = 0x12000, scoped, tag = 'internal scratch']
  %s0 = inlined_call_operand.vmem [shape: bf16[8,128], index: 0, kind: input, shape index: {}]
  %s1 = inlined_call_operand.hbm [shape: bf16[128,128], index: 1, kind: input, shape index: {}]
  %s2 = inlined_call_operand.hbm [shape: bf16[128,128], index: 2, kind: input, shape index: {}]
  %s3 = inlined_call_operand.hbm [shape: bf16[128,128], index: 3, kind: input, shape index: {}]
  %s4 = inlined_call_operand.vmem [shape: f32[7,128], index: 4, kind: input, shape index: {}]
  %s5 = inlined_call_operand.hbm [shape: f32[8,128], index: 5, kind: output, shape index: {}]
  %s6 = sld [smem:[#allocation0]]
  $region42: #{_ffnn_forward_jit.1} parent=0
    _
  %s8 = ssub.s32 1, %s6
  %s9 = scalar_select 0, %s8, %s6
  $region1: #{_ffnn_forward_jit.1} parent=0
    #allocation2 [shape = 'u8[32768]{0}', space=vmem, size = 0x8000, scoped, tag = 'input window, operand 1, single buffered']
    #allocation3 [shape = 's32[1]{0}', space=sflag, size = 0x4, scoped, tag = 'scoped memory for _ffnn_forward_jit.1']
    #allocation4 [shape = 's32[1]{0}', space=sflag, size = 0x4, scoped, tag = 'scoped memory for _ffnn_forward_jit.1']
    #allocation5 [shape = 'u8[32768]{0}', space=vmem, size = 0x8000, scoped, tag = 'input window, operand 2, single buffered']
    #allocation6 [shape = 's32[1]{0}', space=sflag, size = 0x4, scoped, tag = 'scoped memory for _ffnn_forward_jit.1']
    #allocation7 [shape = 'u8[32768]{0}', space=vmem, size = 0x8000, scoped, tag = 'input window, operand 3, single buffered']
    #allocation8 [shape = 'u8[4096]{0}', space=vmem, size = 0x1000, scoped, tag = 'output window, operand 0, single buffered']
    %10 = vsyncpa [#allocation3], 0
    %11 = vsyncpa [#allocation6], 0
    %12 = vsyncpa [#allocation4], 0
    // Predicated region
    $region2: #{_ffnn_forward_jit.1} parent=1 // pred_check
      _
    $region3: #{_ffnn_forward_jit.1} parent=1 // pred_check_branch
      %14 = sbr.rel (0) target = $region5
    $region4: #{_ffnn_forward_jit.1} parent=1 // pred_region
      _
    $region5: #{_ffnn_forward_jit.1} parent=1 // pred_fallthru
      _
    // Predicated region
    $region6: #{_ffnn_forward_jit.1} parent=1 // pred_check
      _
    $region7: #{_ffnn_forward_jit.1} parent=1 // pred_check_branch
      %16 = sbr.rel (0) target = $region9
    $region8: #{_ffnn_forward_jit.1} parent=1 // pred_region
      %s18 = ssub.s32 1024, 1024
      %19 = vsyncadd [#allocation3], %s18
      %s20 = sshll.u32 [#allocation2], 4
      %s21 = int_to_ptr.vmem [resolvable:$true] %s20
      %26 = dma.hbm_to_vmem [thread:$0]  %s1, 1024, %s21, [#allocation3], 64, 64, 4
    $region9: #{_ffnn_forward_jit.1} parent=1 // pred_fallthru
      _
    // Predicated region
    $region10: #{_ffnn_forward_jit.1} parent=1 // pred_check
      _
    $region11: #{_ffnn_forward_jit.1} parent=1 // pred_check_branch
      %28 = sbr.rel (0) target = $region13
    $region12: #{_ffnn_forward_jit.1} parent=1 // pred_region
      %s30 = ssub.s32 1024, 1024
      %31 = vsyncadd [#allocation6], %s30
      %s32 = sshll.u32 [#allocation5], 4
      %s33 = int_to_ptr.vmem [resolvable:$true] %s32
      %38 = dma.hbm_to_vmem [thread:$0]  %s2, 1024, %s33, [#allocation6], 64, 64, 4
    $region13: #{_ffnn_forward_jit.1} parent=1 // pred_fallthru
      _
    // Predicated region
    $region14: #{_ffnn_forward_jit.1} parent=1 // pred_check
      _
    $region15: #{_ffnn_forward_jit.1} parent=1 // pred_check_branch
      %40 = sbr.rel (0) target = $region17
    $region16: #{_ffnn_forward_jit.1} parent=1 // pred_region
      %s42 = ssub.s32 1024, 1024
      %43 = vsyncadd [#allocation6], %s42
      %s44 = sshll.u32 [#allocation7], 4
      %s45 = int_to_ptr.vmem [resolvable:$true] %s44
      %50 = dma.hbm_to_vmem [thread:$0]  %s3, 1024, %s45, [#allocation6], 64, 64, 4
    $region17: #{_ffnn_forward_jit.1} parent=1 // pred_fallthru
      _
    // Predicated region
    $region18: #{_ffnn_forward_jit.1} parent=1 // pred_check
      _
    $region19: #{_ffnn_forward_jit.1} parent=1 // pred_check_branch
      %52 = sbr.rel (0) target = $region21
    $region20: #{_ffnn_forward_jit.1} parent=1 // pred_region
      _
    $region21: #{_ffnn_forward_jit.1} parent=1 // pred_fallthru
      _
    // Predicated region
    $region22: #{_ffnn_forward_jit.1} parent=1 // pred_check
      _
    $region23: #{_ffnn_forward_jit.1} parent=1 // pred_check_branch
      %54 = sbr.rel (0) target = $region25
    $region24: #{_ffnn_forward_jit.1} parent=1 // pred_region
      %55 = dma.done [#allocation3], 1024
    $region25: #{_ffnn_forward_jit.1} parent=1 // pred_fallthru
      _
    // Predicated region
    $region26: #{_ffnn_forward_jit.1} parent=1 // pred_check
      _
    $region27: #{_ffnn_forward_jit.1} parent=1 // pred_check_branch
      %57 = sbr.rel (0) target = $region29
    $region28: #{_ffnn_forward_jit.1} parent=1 // pred_region
      %58 = dma.done [#allocation6], 1024
    $region29: #{_ffnn_forward_jit.1} parent=1 // pred_fallthru
      _
    // Predicated region
    $region30: #{_ffnn_forward_jit.1} parent=1 // pred_check
      _
    $region31: #{_ffnn_forward_jit.1} parent=1 // pred_check_branch
      %60 = sbr.rel (0) target = $region33
    $region32: #{_ffnn_forward_jit.1} parent=1 // pred_region
      %61 = dma.done [#allocation6], 1024
    $region33: #{_ffnn_forward_jit.1} parent=1 // pred_fallthru
      _
    %v63 = vld [vmem:[%s0] sm:$0xf]
    %v64 = vld [vmem:[#allocation2] sm:$0xf]
    %v65 = vld [vmem:[#allocation2 + $0x4] sm:$0xf]
    %v66 = vld [vmem:[#allocation2 + $0x8] sm:$0xf]
    %v67 = vld [vmem:[#allocation2 + $0xc] sm:$0xf]
    %v68 = vld [vmem:[#allocation2 + $0x10] sm:$0xf]
    %v69 = vld [vmem:[#allocation2 + $0x14] sm:$0xf]
    %v70 = vld [vmem:[#allocation2 + $0x18] sm:$0xf]
    %v71 = vld [vmem:[#allocation2 + $0x1c] sm:$0xf]
    %v72 = vld [vmem:[#allocation2 + $0x20] sm:$0xf]
    %v73 = vld [vmem:[#allocation2 + $0x24] sm:$0xf]
    %v74 = vld [vmem:[#allocation2 + $0x28] sm:$0xf]
    %v75 = vld [vmem:[#allocation2 + $0x2c] sm:$0xf]
    %v76 = vld [vmem:[#allocation2 + $0x30] sm:$0xf]
    %v77 = vld [vmem:[#allocation2 + $0x34] sm:$0xf]
    %v78 = vld [vmem:[#allocation2 + $0x38] sm:$0xf]
    %v79 = vld [vmem:[#allocation2 + $0x3c] sm:$0xf]
    %v80 = vld [vmem:[%s4] sm:$0x1]
    %v81 = vlaneseq
    %v82 = vshrl.u32 %v81, 7
    %v83 = vsub.s32 0, %v82
    %v84 = vrot.slane %v80, %v83
    %v101 = vunpack.c.l.b16 %v64
    %v102 = vunpack.c.l.b16 %v65
    %v103 = vunpack.c.l.b16 %v66
    %v104 = vunpack.c.l.b16 %v67
    %v105 = vunpack.c.l.b16 %v68
    %v106 = vunpack.c.l.b16 %v69
    %v107 = vunpack.c.l.b16 %v70
    %v108 = vunpack.c.l.b16 %v71
    %v109 = vunpack.c.l.b16 %v72
    %v110 = vunpack.c.l.b16 %v73
    %v111 = vunpack.c.l.b16 %v74
    %v112 = vunpack.c.l.b16 %v75
    %v113 = vunpack.c.l.b16 %v76
    %v114 = vunpack.c.l.b16 %v77
    %v115 = vunpack.c.l.b16 %v78
    %v116 = vunpack.c.l.b16 %v79
    %v117 = vpack.c.b16 %v102, %v101
    %v118 = vpack.c.b16 %v104, %v103
    %v119 = vpack.c.b16 %v106, %v105
    %v120 = vpack.c.b16 %v108, %v107
    %v121 = vpack.c.b16 %v110, %v109
    %v122 = vpack.c.b16 %v112, %v111
    %v123 = vpack.c.b16 %v114, %v113
    %v124 = vpack.c.b16 %v116, %v115
    %133 = vmatprep.subr.bf16.mxu0 0
    %134 = vmatpush1.bf16.msra.mxu0 %v117
    %135 = vmatprep.subr.bf16.mxu0 0
    %136 = vmatpush1.bf16.msra.mxu0 %v118
    %137 = vmatprep.subr.bf16.mxu0 0
    %138 = vmatpush1.bf16.msra.mxu0 %v119
    %139 = vmatprep.subr.bf16.mxu0 0
    %140 = vmatpush1.bf16.msra.mxu0 %v120
    %141 = vmatprep.subr.bf16.mxu0 0
    %142 = vmatpush1.bf16.msra.mxu0 %v121
    %143 = vmatprep.subr.bf16.mxu0 0
    %144 = vmatpush1.bf16.msra.mxu0 %v122
    %145 = vmatprep.subr.bf16.mxu0 0
    %146 = vmatpush1.bf16.msra.mxu0 %v123
    %147 = vmatprep.subr.bf16.mxu0 0
    %148 = vmatpush1.bf16.msra.mxu0 %v124
    %149 = vmatprep.subr.bf16.mxu0 0
    %150 = vmatpush1.bf16.msra.mxu0 0
    %151 = vmatprep.subr.bf16.mxu0 0
    %152 = vmatpush1.bf16.msra.mxu0 0
    %153 = vmatprep.subr.bf16.mxu0 0
    %154 = vmatpush1.bf16.msra.mxu0 0
    %155 = vmatprep.subr.bf16.mxu0 0
    %156 = vmatpush1.bf16.msra.mxu0 0
    %157 = vmatprep.subr.bf16.mxu0 0
    %158 = vmatpush1.bf16.msra.mxu0 0
    %159 = vmatprep.subr.bf16.mxu0 0
    %160 = vmatpush1.bf16.msra.mxu0 0
    %161 = vmatprep.subr.bf16.mxu0 0
    %162 = vmatpush1.bf16.msra.mxu0 0
    %163 = vmatprep.subr.bf16.mxu0 0
    %164 = vmatpush1.bf16.msra.mxu0 0
    %165 = vmatprep.mubr.bf16.mxu0 0
    %166 = vmatmul.mubr.bf16.gmra.mrb[0].mxu0 %v63
    %v167 = vpop.f32.mrb[0].mxu0
    %v168 = vadd.f32 %v84, %v167
    %v169 = vpop.f32.mrb[0].mxu0
    %v170 = vpop.f32.mrb[0].mxu0
    %v171 = vpop.f32.mrb[0].mxu0
    %172 = vdwg.mxu0
    %173 = vadd.xlane.f32.xlu0 %v168
    %v174 = vpop.xlane.xlu0 %173
    %v175 = vmul.f32 %v174, 0.015625
    %v176 = vmul.f32 %v168, %v168
    %177 = vadd.xlane.f32.xlu0 %v176
    %v178 = vpop.xlane.xlu0 %177
    %v179 = vmul.f32 %v178, 0.015625
    %v180 = vmul.f32 %v175, %v175
    %v181 = vsub.f32 %v179, %v180
    %v182 = vsub.f32 %v168, %v175
    %v183 = vadd.f32 %v181, 1e-05
    %v184 = vrsqrt.pop %v183
    %v185 = vmul.f32 %v182, %v184
    %v186 = vld [vmem:[%s4 + $0x1] sm:$0x1]
    %v187 = vlaneseq
    %v188 = vshrl.u32 %v187, 7
    %v189 = vsub.s32 0, %v188
    %v190 = vrot.slane %v186, %v189
    %v191 = vmul.f32 %v185, %v190
    %v192 = vld [vmem:[%s4 + $0x2] sm:$0x1]
    %v193 = vlaneseq
    %v194 = vshrl.u32 %v193, 7
    %v195 = vsub.s32 0, %v194
    %v196 = vrot.slane %v192, %v195
    %v197 = vadd.f32 %v191, %v196
    %vm198 = vcmp.ge.f32.partialorder %v197, 0.0
    %v199 = vmul.f32 %v197, 0.01
    %v200 = vsel %vm198, %v197, %v199
    %v201 = vpack.c.bf16 %v200, %v200
    %v202 = vld [vmem:[#allocation5] sm:$0xf]
    %v203 = vld [vmem:[#allocation5 + $0x4] sm:$0xf]
    %v204 = vld [vmem:[#allocation5 + $0x8] sm:$0xf]
    %v205 = vld [vmem:[#allocation5 + $0xc] sm:$0xf]
    %v206 = vld [vmem:[#allocation5 + $0x10] sm:$0xf]
    %v207 = vld [vmem:[#allocation5 + $0x14] sm:$0xf]
    %v208 = vld [vmem:[#allocation5 + $0x18] sm:$0xf]
    %v209 = vld [vmem:[#allocation5 + $0x1c] sm:$0xf]
    %v210 = vld [vmem:[#allocation5 + $0x20] sm:$0xf]
    %v211 = vld [vmem:[#allocation5 + $0x24] sm:$0xf]
    %v212 = vld [vmem:[#allocation5 + $0x28] sm:$0xf]
    %v213 = vld [vmem:[#allocation5 + $0x2c] sm:$0xf]
    %v214 = vld [vmem:[#allocation5 + $0x30] sm:$0xf]
    %v215 = vld [vmem:[#allocation5 + $0x34] sm:$0xf]
    %v216 = vld [vmem:[#allocation5 + $0x38] sm:$0xf]
    %v217 = vld [vmem:[#allocation5 + $0x3c] sm:$0xf]
    %v218 = vld [vmem:[%s4 + $0x3] sm:$0x1]
    %v219 = vlaneseq
    %v220 = vshrl.u32 %v219, 7
    %v221 = vsub.s32 0, %v220
    %v222 = vrot.slane %v218, %v221
    %v239 = vunpack.c.l.b16 %v202
    %v240 = vunpack.c.l.b16 %v203
    %v241 = vunpack.c.l.b16 %v204
    %v242 = vunpack.c.l.b16 %v205
    %v243 = vunpack.c.l.b16 %v206
    %v244 = vunpack.c.l.b16 %v207
    %v245 = vunpack.c.l.b16 %v208
    %v246 = vunpack.c.l.b16 %v209
    %v247 = vunpack.c.l.b16 %v210
    %v248 = vunpack.c.l.b16 %v211
    %v249 = vunpack.c.l.b16 %v212
    %v250 = vunpack.c.l.b16 %v213
    %v251 = vunpack.c.l.b16 %v214
    %v252 = vunpack.c.l.b16 %v215
    %v253 = vunpack.c.l.b16 %v216
    %v254 = vunpack.c.l.b16 %v217
    %v255 = vpack.c.b16 %v240, %v239
    %v256 = vpack.c.b16 %v242, %v241
    %v257 = vpack.c.b16 %v244, %v243
    %v258 = vpack.c.b16 %v246, %v245
    %v259 = vpack.c.b16 %v248, %v247
    %v260 = vpack.c.b16 %v250, %v249
    %v261 = vpack.c.b16 %v252, %v251
    %v262 = vpack.c.b16 %v254, %v253
    %271 = vmatprep.subr.bf16.mxu0 0
    %272 = vmatpush1.bf16.msra.mxu0 %v255
    %273 = vmatprep.subr.bf16.mxu0 0
    %274 = vmatpush1.bf16.msra.mxu0 %v256
    %275 = vmatprep.subr.bf16.mxu0 0
    %276 = vmatpush1.bf16.msra.mxu0 %v257
    %277 = vmatprep.subr.bf16.mxu0 0
    %278 = vmatpush1.bf16.msra.mxu0 %v258
    %279 = vmatprep.subr.bf16.mxu0 0
    %280 = vmatpush1.bf16.msra.mxu0 %v259
    %281 = vmatprep.subr.bf16.mxu0 0
    %282 = vmatpush1.bf16.msra.mxu0 %v260
    %283 = vmatprep.subr.bf16.mxu0 0
    %284 = vmatpush1.bf16.msra.mxu0 %v261
    %285 = vmatprep.subr.bf16.mxu0 0
    %286 = vmatpush1.bf16.msra.mxu0 %v262
    %287 = vmatprep.subr.bf16.mxu0 0
    %288 = vmatpush1.bf16.msra.mxu0 0
    %289 = vmatprep.subr.bf16.mxu0 0
    %290 = vmatpush1.bf16.msra.mxu0 0
    %291 = vmatprep.subr.bf16.mxu0 0
    %292 = vmatpush1.bf16.msra.mxu0 0
    %293 = vmatprep.subr.bf16.mxu0 0
    %294 = vmatpush1.bf16.msra.mxu0 0
    %295 = vmatprep.subr.bf16.mxu0 0
    %296 = vmatpush1.bf16.msra.mxu0 0
    %297 = vmatprep.subr.bf16.mxu0 0
    %298 = vmatpush1.bf16.msra.mxu0 0
    %299 = vmatprep.subr.bf16.mxu0 0
    %300 = vmatpush1.bf16.msra.mxu0 0
    %301 = vmatprep.subr.bf16.mxu0 0
    %302 = vmatpush1.bf16.msra.mxu0 0
    %303 = vmatprep.mubr.bf16.mxu0 0
    %304 = vmatmul.mubr.bf16.gmra.mrb[0].mxu0 %v201
    %v305 = vpop.f32.mrb[0].mxu0
    %v306 = vadd.f32 %v222, %v305
    %v307 = vpop.f32.mrb[0].mxu0
    %v308 = vpop.f32.mrb[0].mxu0
    %v309 = vpop.f32.mrb[0].mxu0
    %310 = vdwg.mxu0
    %311 = vadd.xlane.f32.xlu0 %v306
    %v312 = vpop.xlane.xlu0 %311
    %v313 = vmul.f32 %v312, 0.03125
    %v314 = vmul.f32 %v306, %v306
    %315 = vadd.xlane.f32.xlu0 %v314
    %v316 = vpop.xlane.xlu0 %315
    %v317 = vmul.f32 %v316, 0.03125
    %v318 = vmul.f32 %v313, %v313
    %v319 = vsub.f32 %v317, %v318
    %v320 = vsub.f32 %v306, %v313
    %v321 = vadd.f32 %v319, 1e-05
    %v322 = vrsqrt.pop %v321
    %v323 = vmul.f32 %v320, %v322
    %v324 = vld [vmem:[%s4 + $0x4] sm:$0x1]
    %v325 = vlaneseq
    %v326 = vshrl.u32 %v325, 7
    %v327 = vsub.s32 0, %v326
    %v328 = vrot.slane %v324, %v327
    %v329 = vmul.f32 %v323, %v328
    %v330 = vld [vmem:[%s4 + $0x5] sm:$0x1]
    %v331 = vlaneseq
    %v332 = vshrl.u32 %v331, 7
    %v333 = vsub.s32 0, %v332
    %v334 = vrot.slane %v330, %v333
    %v335 = vadd.f32 %v329, %v334
    %vm336 = vcmp.ge.f32.partialorder %v335, 0.0
    %v337 = vmul.f32 %v335, 0.01
    %v338 = vsel %vm336, %v335, %v337
    %v339 = vpack.c.bf16 %v338, %v338
    %v340 = vld [vmem:[#allocation7] sm:$0xf]
    %v341 = vld [vmem:[#allocation7 + $0x4] sm:$0xf]
    %v342 = vld [vmem:[#allocation7 + $0x8] sm:$0xf]
    %v343 = vld [vmem:[#allocation7 + $0xc] sm:$0xf]
    %v344 = vld [vmem:[#allocation7 + $0x10] sm:$0xf]
    %v345 = vld [vmem:[#allocation7 + $0x14] sm:$0xf]
    %v346 = vld [vmem:[#allocation7 + $0x18] sm:$0xf]
    %v347 = vld [vmem:[#allocation7 + $0x1c] sm:$0xf]
    %v348 = vld [vmem:[#allocation7 + $0x20] sm:$0xf]
    %v349 = vld [vmem:[#allocation7 + $0x24] sm:$0xf]
    %v350 = vld [vmem:[#allocation7 + $0x28] sm:$0xf]
    %v351 = vld [vmem:[#allocation7 + $0x2c] sm:$0xf]
    %v352 = vld [vmem:[#allocation7 + $0x30] sm:$0xf]
    %v353 = vld [vmem:[#allocation7 + $0x34] sm:$0xf]
    %v354 = vld [vmem:[#allocation7 + $0x38] sm:$0xf]
    %v355 = vld [vmem:[#allocation7 + $0x3c] sm:$0xf]
    %v356 = vld [vmem:[%s4 + $0x6] sm:$0x1]
    %v357 = vlaneseq
    %v358 = vshrl.u32 %v357, 7
    %v359 = vsub.s32 0, %v358
    %v360 = vrot.slane %v356, %v359
    %v377 = vunpack.c.l.b16 %v340
    %v378 = vunpack.c.l.b16 %v341
    %v379 = vunpack.c.l.b16 %v342
    %v380 = vunpack.c.l.b16 %v343
    %v381 = vunpack.c.l.b16 %v344
    %v382 = vunpack.c.l.b16 %v345
    %v383 = vunpack.c.l.b16 %v346
    %v384 = vunpack.c.l.b16 %v347
    %v385 = vunpack.c.l.b16 %v348
    %v386 = vunpack.c.l.b16 %v349
    %v387 = vunpack.c.l.b16 %v350
    %v388 = vunpack.c.l.b16 %v351
    %v389 = vunpack.c.l.b16 %v352
    %v390 = vunpack.c.l.b16 %v353
    %v391 = vunpack.c.l.b16 %v354
    %v392 = vunpack.c.l.b16 %v355
    %v393 = vpack.c.b16 %v378, %v377
    %v394 = vpack.c.b16 %v380, %v379
    %v395 = vpack.c.b16 %v382, %v381
    %v396 = vpack.c.b16 %v384, %v383
    %v397 = vpack.c.b16 %v386, %v385
    %v398 = vpack.c.b16 %v388, %v387
    %v399 = vpack.c.b16 %v390, %v389
    %v400 = vpack.c.b16 %v392, %v391
    %409 = vmatprep.subr.bf16.mxu0 0
    %410 = vmatpush1.bf16.msra.mxu0 %v393
    %411 = vmatprep.subr.bf16.mxu0 0
    %412 = vmatpush1.bf16.msra.mxu0 %v394
    %413 = vmatprep.subr.bf16.mxu0 0
    %414 = vmatpush1.bf16.msra.mxu0 %v395
    %415 = vmatprep.subr.bf16.mxu0 0
    %416 = vmatpush1.bf16.msra.mxu0 %v396
    %417 = vmatprep.subr.bf16.mxu0 0
    %418 = vmatpush1.bf16.msra.mxu0 %v397
    %419 = vmatprep.subr.bf16.mxu0 0
    %420 = vmatpush1.bf16.msra.mxu0 %v398
    %421 = vmatprep.subr.bf16.mxu0 0
    %422 = vmatpush1.bf16.msra.mxu0 %v399
    %423 = vmatprep.subr.bf16.mxu0 0
    %424 = vmatpush1.bf16.msra.mxu0 %v400
    %425 = vmatprep.subr.bf16.mxu0 0
    %426 = vmatpush1.bf16.msra.mxu0 0
    %427 = vmatprep.subr.bf16.mxu0 0
    %428 = vmatpush1.bf16.msra.mxu0 0
    %429 = vmatprep.subr.bf16.mxu0 0
    %430 = vmatpush1.bf16.msra.mxu0 0
    %431 = vmatprep.subr.bf16.mxu0 0
    %432 = vmatpush1.bf16.msra.mxu0 0
    %433 = vmatprep.subr.bf16.mxu0 0
    %434 = vmatpush1.bf16.msra.mxu0 0
    %435 = vmatprep.subr.bf16.mxu0 0
    %436 = vmatpush1.bf16.msra.mxu0 0
    %437 = vmatprep.subr.bf16.mxu0 0
    %438 = vmatpush1.bf16.msra.mxu0 0
    %439 = vmatprep.subr.bf16.mxu0 0
    %440 = vmatpush1.bf16.msra.mxu0 0
    %441 = vmatprep.mubr.bf16.mxu0 0
    %442 = vmatmul.mubr.bf16.gmra.mrb[0].mxu0 %v339
    %v443 = vpop.f32.mrb[0].mxu0
    %v444 = vadd.f32 %v360, %v443
    %v445 = vpop.f32.mrb[0].mxu0
    %v446 = vpop.f32.mrb[0].mxu0
    %v447 = vpop.f32.mrb[0].mxu0
    %448 = vdwg.mxu0
    %449 = vst [vmem:[#allocation8] sm:$0xff] %v444
    // Predicated region
    $region34: #{_ffnn_forward_jit.1} parent=1 // pred_check
      _
    $region35: #{_ffnn_forward_jit.1} parent=1 // pred_check_branch
      %451 = sbr.rel (0) target = $region37
    $region36: #{_ffnn_forward_jit.1} parent=1 // pred_region
      %s453 = ssub.s32 128, 128
      %454 = vsyncadd [#allocation4], %s453
      %s456 = sshll.u32 [#allocation8], 4
      %s457 = int_to_ptr.vmem [resolvable:$true] %s456
      %459 = dma.vmem_to_hbm [thread:$0]  %s457, 128, %s5, [#allocation4]
    $region37: #{_ffnn_forward_jit.1} parent=1 // pred_fallthru
      _
    // Predicated region
    $region38: #{_ffnn_forward_jit.1} parent=1 // pred_check
      _
    $region39: #{_ffnn_forward_jit.1} parent=1 // pred_check_branch
      %461 = sbr.rel (0) target = $region41
    $region40: #{_ffnn_forward_jit.1} parent=1 // pred_region
      %462 = dma.done [#allocation4], 128
    $region41: #{_ffnn_forward_jit.1} parent=1 // pred_fallthru
      _
    %463 = vsyncpa [#allocation3], 1
    %464 = vsyncpa [#allocation6], 1
    %465 = vsyncpa [#allocation4], 1

</llo_original>
